<compile_context>
chip_gen: v7x
topology: tpu7x:2x2x1
jax: 0.10.0
libtpu: 0.0.40
codegen_flags: <defaults>
</compile_context>

<pallas_src>
import functools

import jax
import jax.numpy as jnp
from jax import lax
from jax.experimental import pallas as pl
from jax.experimental.pallas import tpu as pltpu


def msa_kernel(x_ref, wqkv_ref, bqkv_ref, o_ref, *, n_heads, d_head):
    # x_ref    : (bt, N, d)   bt sequences of one batch tile
    # wqkv_ref : (d, 3*d)     block-diagonal, pre-transposed packed Q|K|V weights
    #                         (Q block already scaled by 1/sqrt(d_head))
    # bqkv_ref : (1, 3*d)     packed Q|K|V biases (Q part pre-scaled)
    # o_ref    : (bt, N, d)
    bt, N, d = x_ref.shape

    # Single fused, lane-dense projection over all sequences in the tile:
    # (bt*N, d) @ (d, 3d) -> (bt*N, 3d)
    x = x_ref[...].reshape(bt * N, d)
    qkv = jnp.dot(x, wqkv_ref[...],
                  preferred_element_type=jnp.float32) + bqkv_ref[...]

    outs = []
    for b in range(bt):            # static, small -> unrolled
        row0 = b * N
        head_outs = []
        for h in range(n_heads):   # static, tiny head count -> unrolled
            lo = h * d_head
            hi = lo + d_head
            q = qkv[row0:row0 + N, lo:hi]                    # (N, d_head), pre-scaled
            k = qkv[row0:row0 + N, d + lo:d + hi]            # (N, d_head)
            v = qkv[row0:row0 + N, 2 * d + lo:2 * d + hi]    # (N, d_head)

            # scores = (q/sqrt(d_head)) @ k.T without an explicit transpose.
            scores = lax.dot_general(
                q, k, (((1,), (1,)), ((), ())),
                preferred_element_type=jnp.float32)          # (N, N)

            # numerically-stable softmax along last dim (matches nn.Softmax(dim=-1))
            m = jnp.max(scores, axis=-1, keepdims=True)
            e = jnp.exp(scores - m)
            attn = e * pl.reciprocal(jnp.sum(e, axis=-1, keepdims=True),
                                     approx=False)

            head_outs.append(jnp.dot(attn, v,
                                     preferred_element_type=jnp.float32))

        outs.append(jnp.concatenate(head_outs, axis=-1))     # (N, d)

    # One full-block store per grid step.
    o_ref[...] = jnp.stack(outs, axis=0).astype(o_ref.dtype)


def _pack_qkv(wq, bq, wk, bk, wv, bv, *, scale):
    """Pack per-head torch Linear params into a block-diagonal, pre-transposed (d, 3*d)
    weight and a (1, 3*d) bias so that x @ W + b == per-head (seq @ w[h].T + b[h]),
    with the attention scale folded into the Q block."""
    H, dh, _ = wq.shape
    d = H * dh
    eye = jnp.eye(H, dtype=wq.dtype)

    def blockdiag_T(w):
        # bd[h*dh + i, g*dh + j] = delta(h, g) * w[h, j, i]   (per-head w.T on the diagonal)
        wT = jnp.transpose(w, (0, 2, 1))                      # (H, dh_in, dh_out)
        return jnp.einsum('hg,hij->higj', eye, wT).reshape(d, d)

    w_packed = jnp.concatenate(
        [blockdiag_T(wq) * scale, blockdiag_T(wk), blockdiag_T(wv)], axis=1)   # (d, 3d)
    b_packed = jnp.concatenate(
        [bq.reshape(-1) * scale, bk.reshape(-1), bv.reshape(-1)]).reshape(1, 3 * d)
    return w_packed, b_packed


def _pick_batch_tile(B, N):
    """Largest divisor of B such that bt*N <= 128 (fills MXU rows on the fused QKV
    projection and amortizes per-grid-step overhead)."""
    target = max(1, 128 // max(N, 1))
    bt = 1
    for cand in range(1, B + 1):
        if B % cand == 0 and cand <= target:
            bt = cand
    return bt


def my_msa(x, wq, bq, wk, bk, wv, bv, *, n_heads):
    B, N, d = x.shape
    assert d % n_heads == 0
    d_head = d // n_heads
    scale = 1.0 / (d_head ** 0.5)

    # Host-side packing (zero kernel cost, folds the attention scale into Q).
    w_packed, b_packed = _pack_qkv(wq, bq, wk, bk, wv, bv, scale=scale)

    bt = _pick_batch_tile(B, N)
    kernel = functools.partial(msa_kernel, n_heads=n_heads, d_head=d_head)

    seq_spec = pl.BlockSpec((bt, N, d), lambda i: (i, 0, 0))
    w_spec = pl.BlockSpec((d, 3 * d), lambda i: (0, 0))
    b_spec = pl.BlockSpec((1, 3 * d), lambda i: (0, 0))

    return pl.pallas_call(
        kernel,
        out_shape=jax.ShapeDtypeStruct((B, N, d), x.dtype),
        grid_spec=pltpu.PrefetchScalarGridSpec(
            num_scalar_prefetch=0,
            grid=(B // bt,),
            in_specs=[seq_spec, w_spec, b_spec],
            out_specs=seq_spec,
        ),
        compiler_params=pltpu.CompilerParams(
            dimension_semantics=("parallel",),
            vmem_limit_bytes=32 << 20,
        ),
    )(x, w_packed, b_packed)


def my_msa_ref(x, wq, bq, wk, bk, wv, bv, *, n_heads):
    """Pure-JAX reference matching the PyTorch forward exactly."""
    B, N, d = x.shape
    d_head = d // n_heads
    outs = []
    for b in range(B):
        heads = []
        for h in range(n_heads):
            seq = x[b, :, h * d_head:(h + 1) * d_head]
            q = seq @ wq[h].T + bq[h]
            k = seq @ wk[h].T + bk[h]
            v = seq @ wv[h].T + bv[h]
            a = jax.nn.softmax(q @ k.T / (d_head ** 0.5), axis=-1)
            heads.append(a @ v)
        outs.append(jnp.concatenate(heads, axis=-1)[None])
    return jnp.concatenate(outs, axis=0)


if __name__ == "__main__":
    B, N, d, n_heads = 2, 8, 32, 2
    d_head = d // n_heads

    key = jax.random.PRNGKey(0)
    kx, kq, kbq, kk, kbk, kv, kbv = jax.random.split(key, 7)

    x = jax.random.normal(kx, (B, N, d), dtype=jnp.float32)
    # torch.nn.Linear layout: W (out, in), b (out,)
    lim = 1.0 / (d_head ** 0.5)
    wq = jax.random.uniform(kq, (n_heads, d_head, d_head), jnp.float32, -lim, lim)
    bq = jax.random.uniform(kbq, (n_heads, d_head), jnp.float32, -lim, lim)
    wk = jax.random.uniform(kk, (n_heads, d_head, d_head), jnp.float32, -lim, lim)
    bk = jax.random.uniform(kbk, (n_heads, d_head), jnp.float32, -lim, lim)
    wv = jax.random.uniform(kv, (n_heads, d_head, d_head), jnp.float32, -lim, lim)
    bv = jax.random.uniform(kbv, (n_heads, d_head), jnp.float32, -lim, lim)

    out = my_msa(x, wq, bq, wk, bk, wv, bv, n_heads=n_heads)
    out = jax.block_until_ready(out)

    ref = my_msa_ref(x, wq, bq, wk, bk, wv, bv, n_heads=n_heads)
    assert out.shape == (B, N, d)
    assert jnp.allclose(out, ref, atol=1e-5, rtol=1e-5), "mismatch vs reference"

    print("KERNEL_OK")
</pallas_src>

<mosaic_0001>
module attributes {stable_mosaic.version = 11 : i64} {
  func.func @msa_kernel(%arg0: i32, %arg1: memref<2x8x32xf32, #tpu.memory_space<vmem>>, %arg2: memref<32x96xf32, #tpu.memory_space<vmem>>, %arg3: memref<1x96xf32, #tpu.memory_space<vmem>>, %arg4: memref<2x8x32xf32, #tpu.memory_space<vmem>>) attributes {dimension_semantics = [#tpu.dimension_semantics<parallel>], iteration_bounds = array<i64: 1>, scalar_prefetch = 0 : i64, scratch_operands = 0 : i64, tpu.core_type = #tpu.core_type<tc>, window_params = [{transform_indices = @transform_0, window_bounds = array<i64: 2, 8, 32>}, {pipeline_mode = #tpu.pipeline_mode<synchronous>, transform_indices = @transform_1, window_bounds = array<i64: 32, 96>}, {pipeline_mode = #tpu.pipeline_mode<synchronous>, transform_indices = @transform_2, window_bounds = array<i64: 1, 96>}, {transform_indices = @transform_3, window_bounds = array<i64: 2, 8, 32>}]} {
    %c0 = arith.constant 0 : index
    %c0_0 = arith.constant 0 : index
    %c0_1 = arith.constant 0 : index
    %0 = vector.load %arg1[%c0, %c0_0, %c0_1] : memref<2x8x32xf32, #tpu.memory_space<vmem>>, vector<2x8x32xf32>
    %1 = vector.shape_cast %0 : vector<2x8x32xf32> to vector<16x32xf32>
    %c0_2 = arith.constant 0 : index
    %c0_3 = arith.constant 0 : index
    %2 = vector.load %arg2[%c0_2, %c0_3] : memref<32x96xf32, #tpu.memory_space<vmem>>, vector<32x96xf32>
    %cst = arith.constant dense<0.000000e+00> : vector<16x96xf32>
    %3 = tpu.matmul %1, %2, %cst {dimension_numbers = #tpu.dot_dimension_numbers<[1], [0], [0], [1], [0, 0, 1, 1], [], []>} : vector<16x32xf32>, vector<32x96xf32>, vector<16x96xf32> -> vector<16x96xf32>
    %c0_4 = arith.constant 0 : index
    %c0_5 = arith.constant 0 : index
    %4 = vector.load %arg3[%c0_4, %c0_5] : memref<1x96xf32, #tpu.memory_space<vmem>>, vector<1x96xf32>
    %5 = vector.broadcast %4 : vector<1x96xf32> to vector<16x96xf32>
    %6 = arith.addf %3, %5 : vector<16x96xf32>
    %7 = vector.extract_strided_slice %6 {offsets = [0, 0], sizes = [8, 16], strides = [1, 1]} : vector<16x96xf32> to vector<8x16xf32>
    %8 = vector.extract_strided_slice %6 {offsets = [0, 32], sizes = [8, 16], strides = [1, 1]} : vector<16x96xf32> to vector<8x16xf32>
    %9 = vector.extract_strided_slice %6 {offsets = [0, 64], sizes = [8, 16], strides = [1, 1]} : vector<16x96xf32> to vector<8x16xf32>
    %cst_6 = arith.constant dense<0.000000e+00> : vector<8x8xf32>
    %10 = tpu.matmul %7, %8, %cst_6 {dimension_numbers = #tpu.dot_dimension_numbers<[1], [1], [0], [0], [0, 0, 1, 0], [], []>} : vector<8x16xf32>, vector<8x16xf32>, vector<8x8xf32> -> vector<8x8xf32>
    %cst_7 = arith.constant dense<0xFF800000> : vector<8xf32>
    %11 = vector.multi_reduction <maximumf>, %10, %cst_7 [1] : vector<8x8xf32> to vector<8xf32>
    %12 = vector.shape_cast %11 : vector<8xf32> to vector<8x1xf32>
    %13 = vector.broadcast %12 : vector<8x1xf32> to vector<8x8xf32>
    %14 = arith.subf %10, %13 : vector<8x8xf32>
    %15 = math.exp %14 : vector<8x8xf32>
    %cst_8 = arith.constant dense<0.000000e+00> : vector<8xf32>
    %16 = vector.multi_reduction <add>, %15, %cst_8 [1] : vector<8x8xf32> to vector<8xf32>
    %17 = vector.shape_cast %16 : vector<8xf32> to vector<8x1xf32>
    %18 = tpu.reciprocal %17 : vector<8x1xf32> -> vector<8x1xf32>
    %19 = vector.broadcast %18 : vector<8x1xf32> to vector<8x8xf32>
    %20 = arith.mulf %15, %19 : vector<8x8xf32>
    %cst_9 = arith.constant dense<0.000000e+00> : vector<8x16xf32>
    %21 = tpu.matmul %20, %9, %cst_9 {dimension_numbers = #tpu.dot_dimension_numbers<[1], [0], [0], [1], [0, 0, 1, 1], [], []>} : vector<8x8xf32>, vector<8x16xf32>, vector<8x16xf32> -> vector<8x16xf32>
    %22 = vector.extract_strided_slice %6 {offsets = [0, 16], sizes = [8, 16], strides = [1, 1]} : vector<16x96xf32> to vector<8x16xf32>
    %23 = vector.extract_strided_slice %6 {offsets = [0, 48], sizes = [8, 16], strides = [1, 1]} : vector<16x96xf32> to vector<8x16xf32>
    %24 = vector.extract_strided_slice %6 {offsets = [0, 80], sizes = [8, 16], strides = [1, 1]} : vector<16x96xf32> to vector<8x16xf32>
    %cst_10 = arith.constant dense<0.000000e+00> : vector<8x8xf32>
    %25 = tpu.matmul %22, %23, %cst_10 {dimension_numbers = #tpu.dot_dimension_numbers<[1], [1], [0], [0], [0, 0, 1, 0], [], []>} : vector<8x16xf32>, vector<8x16xf32>, vector<8x8xf32> -> vector<8x8xf32>
    %cst_11 = arith.constant dense<0xFF800000> : vector<8xf32>
    %26 = vector.multi_reduction <maximumf>, %25, %cst_11 [1] : vector<8x8xf32> to vector<8xf32>
    %27 = vector.shape_cast %26 : vector<8xf32> to vector<8x1xf32>
    %28 = vector.broadcast %27 : vector<8x1xf32> to vector<8x8xf32>
    %29 = arith.subf %25, %28 : vector<8x8xf32>
    %30 = math.exp %29 : vector<8x8xf32>
    %cst_12 = arith.constant dense<0.000000e+00> : vector<8xf32>
    %31 = vector.multi_reduction <add>, %30, %cst_12 [1] : vector<8x8xf32> to vector<8xf32>
    %32 = vector.shape_cast %31 : vector<8xf32> to vector<8x1xf32>
    %33 = tpu.reciprocal %32 : vector<8x1xf32> -> vector<8x1xf32>
    %34 = vector.broadcast %33 : vector<8x1xf32> to vector<8x8xf32>
    %35 = arith.mulf %30, %34 : vector<8x8xf32>
    %cst_13 = arith.constant dense<0.000000e+00> : vector<8x16xf32>
    %36 = tpu.matmul %35, %24, %cst_13 {dimension_numbers = #tpu.dot_dimension_numbers<[1], [0], [0], [1], [0, 0, 1, 1], [], []>} : vector<8x8xf32>, vector<8x16xf32>, vector<8x16xf32> -> vector<8x16xf32>
    %37 = tpu.concatenate %21, %36 in 1 : vector<8x16xf32>, vector<8x16xf32> -> vector<8x32xf32>
    %38 = vector.extract_strided_slice %6 {offsets = [8, 0], sizes = [8, 16], strides = [1, 1]} : vector<16x96xf32> to vector<8x16xf32>
    %39 = vector.extract_strided_slice %6 {offsets = [8, 32], sizes = [8, 16], strides = [1, 1]} : vector<16x96xf32> to vector<8x16xf32>
    %40 = vector.extract_strided_slice %6 {offsets = [8, 64], sizes = [8, 16], strides = [1, 1]} : vector<16x96xf32> to vector<8x16xf32>
    %cst_14 = arith.constant dense<0.000000e+00> : vector<8x8xf32>
    %41 = tpu.matmul %38, %39, %cst_14 {dimension_numbers = #tpu.dot_dimension_numbers<[1], [1], [0], [0], [0, 0, 1, 0], [], []>} : vector<8x16xf32>, vector<8x16xf32>, vector<8x8xf32> -> vector<8x8xf32>
    %cst_15 = arith.constant dense<0xFF800000> : vector<8xf32>
    %42 = vector.multi_reduction <maximumf>, %41, %cst_15 [1] : vector<8x8xf32> to vector<8xf32>
    %43 = vector.shape_cast %42 : vector<8xf32> to vector<8x1xf32>
    %44 = vector.broadcast %43 : vector<8x1xf32> to vector<8x8xf32>
    %45 = arith.subf %41, %44 : vector<8x8xf32>
    %46 = math.exp %45 : vector<8x8xf32>
    %cst_16 = arith.constant dense<0.000000e+00> : vector<8xf32>
    %47 = vector.multi_reduction <add>, %46, %cst_16 [1] : vector<8x8xf32> to vector<8xf32>
    %48 = vector.shape_cast %47 : vector<8xf32> to vector<8x1xf32>
    %49 = tpu.reciprocal %48 : vector<8x1xf32> -> vector<8x1xf32>
    %50 = vector.broadcast %49 : vector<8x1xf32> to vector<8x8xf32>
    %51 = arith.mulf %46, %50 : vector<8x8xf32>
    %cst_17 = arith.constant dense<0.000000e+00> : vector<8x16xf32>
    %52 = tpu.matmul %51, %40, %cst_17 {dimension_numbers = #tpu.dot_dimension_numbers<[1], [0], [0], [1], [0, 0, 1, 1], [], []>} : vector<8x8xf32>, vector<8x16xf32>, vector<8x16xf32> -> vector<8x16xf32>
    %53 = vector.extract_strided_slice %6 {offsets = [8, 16], sizes = [8, 16], strides = [1, 1]} : vector<16x96xf32> to vector<8x16xf32>
    %54 = vector.extract_strided_slice %6 {offsets = [8, 48], sizes = [8, 16], strides = [1, 1]} : vector<16x96xf32> to vector<8x16xf32>
    %55 = vector.extract_strided_slice %6 {offsets = [8, 80], sizes = [8, 16], strides = [1, 1]} : vector<16x96xf32> to vector<8x16xf32>
    %cst_18 = arith.constant dense<0.000000e+00> : vector<8x8xf32>
    %56 = tpu.matmul %53, %54, %cst_18 {dimension_numbers = #tpu.dot_dimension_numbers<[1], [1], [0], [0], [0, 0, 1, 0], [], []>} : vector<8x16xf32>, vector<8x16xf32>, vector<8x8xf32> -> vector<8x8xf32>
    %cst_19 = arith.constant dense<0xFF800000> : vector<8xf32>
    %57 = vector.multi_reduction <maximumf>, %56, %cst_19 [1] : vector<8x8xf32> to vector<8xf32>
    %58 = vector.shape_cast %57 : vector<8xf32> to vector<8x1xf32>
    %59 = vector.broadcast %58 : vector<8x1xf32> to vector<8x8xf32>
    %60 = arith.subf %56, %59 : vector<8x8xf32>
    %61 = math.exp %60 : vector<8x8xf32>
    %cst_20 = arith.constant dense<0.000000e+00> : vector<8xf32>
    %62 = vector.multi_reduction <add>, %61, %cst_20 [1] : vector<8x8xf32> to vector<8xf32>
    %63 = vector.shape_cast %62 : vector<8xf32> to vector<8x1xf32>
    %64 = tpu.reciprocal %63 : vector<8x1xf32> -> vector<8x1xf32>
    %65 = vector.broadcast %64 : vector<8x1xf32> to vector<8x8xf32>
    %66 = arith.mulf %61, %65 : vector<8x8xf32>
    %cst_21 = arith.constant dense<0.000000e+00> : vector<8x16xf32>
    %67 = tpu.matmul %66, %55, %cst_21 {dimension_numbers = #tpu.dot_dimension_numbers<[1], [0], [0], [1], [0, 0, 1, 1], [], []>} : vector<8x8xf32>, vector<8x16xf32>, vector<8x16xf32> -> vector<8x16xf32>
    %68 = tpu.concatenate %52, %67 in 1 : vector<8x16xf32>, vector<8x16xf32> -> vector<8x32xf32>
    %69 = vector.shape_cast %37 : vector<8x32xf32> to vector<1x8x32xf32>
    %70 = vector.shape_cast %68 : vector<8x32xf32> to vector<1x8x32xf32>
    %71 = tpu.concatenate %69, %70 in 0 : vector<1x8x32xf32>, vector<1x8x32xf32> -> vector<2x8x32xf32>
    %c0_22 = arith.constant 0 : index
    %c0_23 = arith.constant 0 : index
    %c0_24 = arith.constant 0 : index
    %72 = vector.load %arg4[%c0_22, %c0_23, %c0_24] : memref<2x8x32xf32, #tpu.memory_space<vmem>>, vector<2x8x32xf32>
    tpu.vector_store %arg4[%c0_22, %c0_23, %c0_24], %71 {strides = array<i32>} : memref<2x8x32xf32, #tpu.memory_space<vmem>>, vector<2x8x32xf32>,
    return
  }
  func.func @transform_0(%arg0: i32) -> (i32, i32, i32) {
    %c0_i32 = arith.constant 0 : i32
    %c0_i32_0 = arith.constant 0 : i32
    %c0_i32_1 = arith.constant 0 : i32
    return %arg0, %c0_i32, %c0_i32_0 : i32, i32, i32
  }
  func.func @transform_1(%arg0: i32) -> (i32, i32) {
    %c0_i32 = arith.constant 0 : i32
    %c0_i32_0 = arith.constant 0 : i32
    %c0_i32_1 = arith.constant 0 : i32
    return %c0_i32, %c0_i32_0 : i32, i32
  }
  func.func @transform_2(%arg0: i32) -> (i32, i32) {
    %c0_i32 = arith.constant 0 : i32
    %c0_i32_0 = arith.constant 0 : i32
    %c0_i32_1 = arith.constant 0 : i32
    return %c0_i32, %c0_i32_0 : i32, i32
  }
  func.func @transform_3(%arg0: i32) -> (i32, i32, i32) {
    %c0_i32 = arith.constant 0 : i32
    %c0_i32_0 = arith.constant 0 : i32
    %c0_i32_1 = arith.constant 0 : i32
    return %arg0, %c0_i32, %c0_i32_0 : i32, i32, i32
  }
}

</mosaic_0001>

<llo_original>
// kernel: tpu_custom_call.1
$region0: #{tpu_custom_call.1}
  #allocation0 [shape = 'u32[]', space=smem, size = 0x4, offset = 0x4, fixed_abs, tag = 'smem constant byte address 0x4 - core index']
  #allocation1 [shape = 'u32[144,128]{1,0:T(1,128)}', space=vmem, size = 0x12000, scoped, tag = 'internal scratch']
  %s0 = inlined_call_operand.hbm [shape: f32[2,8,32], index: 0, kind: input, shape index: {}]
  %s1 = inlined_call_operand.hbm [shape: f32[32,96], index: 1, kind: input, shape index: {}]
  %s2 = inlined_call_operand.vmem [shape: f32[1,96], index: 2, kind: input, shape index: {}]
  %s3 = inlined_call_operand.hbm [shape: f32[2,8,32], index: 3, kind: output, shape index: {}]
  %s4 = sld [smem:[#allocation0]]
  $region30: #{tpu_custom_call.1} parent=0
    _
  %s6 = ssub.s32 1, %s4
  %s7 = scalar_select 0, %s6, %s4
  $region1: #{tpu_custom_call.1} parent=0
    #allocation2 [shape = 'u8[8192]{0}', space=vmem, size = 0x2000, scoped, tag = 'input window, operand 0, single buffered']
    #allocation3 [shape = 's32[1]{0}', space=sflag, size = 0x4, scoped, tag = 'scoped memory for tpu_custom_call.1']
    #allocation4 [shape = 's32[1]{0}', space=sflag, size = 0x4, scoped, tag = 'scoped memory for tpu_custom_call.1']
    #allocation5 [shape = 'u8[16384]{0}', space=vmem, size = 0x4000, scoped, tag = 'input window, operand 1, single buffered']
    #allocation6 [shape = 's32[1]{0}', space=sflag, size = 0x4, scoped, tag = 'scoped memory for tpu_custom_call.1']
    #allocation7 [shape = 'u8[8192]{0}', space=vmem, size = 0x2000, scoped, tag = 'output window, operand 0, single buffered']
    %8 = vsyncpa [#allocation3], 0
    %9 = vsyncpa [#allocation6], 0
    %10 = vsyncpa [#allocation4], 0
    // Predicated region
    $region2: #{tpu_custom_call.1} parent=1 // pred_check
      _
    $region3: #{tpu_custom_call.1} parent=1 // pred_check_branch
      %12 = sbr.rel (0) target = $region5
    $region4: #{tpu_custom_call.1} parent=1 // pred_region
      %s14 = ssub.s32 256, 256
      %15 = vsyncadd [#allocation3], %s14
      %s16 = sshll.u32 [#allocation2], 4
      %s17 = int_to_ptr.vmem [resolvable:$true] %s16
      %22 = dma.hbm_to_vmem [thread:$0]  %s0, 256, %s17, [#allocation3], 128, 128, 8
    $region5: #{tpu_custom_call.1} parent=1 // pred_fallthru
      _
    // Predicated region
    $region6: #{tpu_custom_call.1} parent=1 // pred_check
      _
    $region7: #{tpu_custom_call.1} parent=1 // pred_check_branch
      %24 = sbr.rel (0) target = $region9
    $region8: #{tpu_custom_call.1} parent=1 // pred_region
      %s26 = ssub.s32 512, 512
      %27 = vsyncadd [#allocation6], %s26
      %s28 = sshll.u32 [#allocation5], 4
      %s29 = int_to_ptr.vmem [resolvable:$true] %s28
      %34 = dma.hbm_to_vmem [thread:$0]  %s1, 512, %s29, [#allocation6], 128, 128, 8
    $region9: #{tpu_custom_call.1} parent=1 // pred_fallthru
      _
    // Predicated region
    $region10: #{tpu_custom_call.1} parent=1 // pred_check
      _
    $region11: #{tpu_custom_call.1} parent=1 // pred_check_branch
      %36 = sbr.rel (0) target = $region13
    $region12: #{tpu_custom_call.1} parent=1 // pred_region
      _
    $region13: #{tpu_custom_call.1} parent=1 // pred_fallthru
      _
    // Predicated region
    $region14: #{tpu_custom_call.1} parent=1 // pred_check
      _
    $region15: #{tpu_custom_call.1} parent=1 // pred_check_branch
      %38 = sbr.rel (0) target = $region17
    $region16: #{tpu_custom_call.1} parent=1 // pred_region
      %39 = dma.done [#allocation3], 256
    $region17: #{tpu_custom_call.1} parent=1 // pred_fallthru
      _
    // Predicated region
    $region18: #{tpu_custom_call.1} parent=1 // pred_check
      _
    $region19: #{tpu_custom_call.1} parent=1 // pred_check_branch
      %41 = sbr.rel (0) target = $region21
    $region20: #{tpu_custom_call.1} parent=1 // pred_region
      %42 = dma.done [#allocation6], 512
    $region21: #{tpu_custom_call.1} parent=1 // pred_fallthru
      _
    %v43 = vld [vmem:[#allocation2] sm:$0xff]
    %v44 = vld [vmem:[#allocation2 + $0x8] sm:$0xff]
    %v45 = vld [vmem:[#allocation5] sm:$0xff]
    %v46 = vld [vmem:[#allocation5 + $0x8] sm:$0xff]
    %v47 = vld [vmem:[#allocation5 + $0x10] sm:$0xff]
    %v48 = vld [vmem:[#allocation5 + $0x18] sm:$0xff]
    %v49 = vld [vmem:[%s2] sm:$0x1]
    %v51 = vlaneseq
    %v52 = vshrl.u32 %v51, 7
    %v53 = vsub.s32 0, %v52
    %v54 = vrot.slane %v49, %v53
    %vm56 = vcmask 261120
    %v58 = vsel %vm56, %v43, 0
    %v61 = vsel %vm56, %v44, 0
    %63 = vmatprep.subr.mxu0 0.0
    %64 = vmatpush1.msra.mxu0 %v45
    %65 = vmatprep.subr.mxu0 0.0
    %66 = vmatpush1.msra.mxu0 %v46
    %67 = vmatprep.subr.mxu0 0.0
    %68 = vmatpush1.msra.mxu0 %v47
    %69 = vmatprep.subr.mxu0 0.0
    %70 = vmatpush1.msra.mxu0 %v48
    %71 = vmatprep.subr.mxu0 0.0
    %72 = vmatpush1.msra.mxu0 0.0
    %73 = vmatprep.subr.mxu0 0.0
    %74 = vmatpush1.msra.mxu0 0.0
    %75 = vmatprep.subr.mxu0 0.0
    %76 = vmatpush1.msra.mxu0 0.0
    %77 = vmatprep.subr.mxu0 0.0
    %78 = vmatpush1.msra.mxu0 0.0
    %79 = vmatprep.subr.mxu0 0.0
    %80 = vmatpush1.msra.mxu0 0.0
    %81 = vmatprep.subr.mxu0 0.0
    %82 = vmatpush1.msra.mxu0 0.0
    %83 = vmatprep.subr.mxu0 0.0
    %84 = vmatpush1.msra.mxu0 0.0
    %85 = vmatprep.subr.mxu0 0.0
    %86 = vmatpush1.msra.mxu0 0.0
    %87 = vmatprep.subr.mxu0 0.0
    %88 = vmatpush1.msra.mxu0 0.0
    %89 = vmatprep.subr.mxu0 0.0
    %90 = vmatpush1.msra.mxu0 0.0
    %91 = vmatprep.subr.mxu0 0.0
    %92 = vmatpush1.msra.mxu0 0.0
    %93 = vmatprep.subr.mxu0 0.0
    %94 = vmatpush1.msra.mxu0 0.0
    %95 = vmatprep.subr.mxu0 0.0
    %96 = vmatpush1.msra.mxu0 0.0
    %97 = vmatprep.subr.mxu0 0.0
    %98 = vmatpush1.msra.mxu0 0.0
    %99 = vmatprep.subr.mxu0 0.0
    %100 = vmatpush1.msra.mxu0 0.0
    %101 = vmatprep.subr.mxu0 0.0
    %102 = vmatpush1.msra.mxu0 0.0
    %103 = vmatprep.subr.mxu0 0.0
    %104 = vmatpush1.msra.mxu0 0.0
    %105 = vmatprep.subr.mxu0 0.0
    %106 = vmatpush1.msra.mxu0 0.0
    %107 = vmatprep.subr.mxu0 0.0
    %108 = vmatpush1.msra.mxu0 0.0
    %109 = vmatprep.subr.mxu0 0.0
    %110 = vmatpush1.msra.mxu0 0.0
    %111 = vmatprep.subr.mxu0 0.0
    %112 = vmatpush1.msra.mxu0 0.0
    %113 = vmatprep.subr.mxu0 0.0
    %114 = vmatpush1.msra.mxu0 0.0
    %115 = vmatprep.subr.mxu0 0.0
    %116 = vmatpush1.msra.mxu0 0.0
    %117 = vmatprep.subr.mxu0 0.0
    %118 = vmatpush1.msra.mxu0 0.0
    %119 = vmatprep.subr.mxu0 0.0
    %120 = vmatpush1.msra.mxu0 0.0
    %121 = vmatprep.subr.mxu0 0.0
    %122 = vmatpush1.msra.mxu0 0.0
    %123 = vmatprep.subr.mxu0 0.0
    %124 = vmatpush1.msra.mxu0 0.0
    %125 = vmatprep.subr.mxu0 0.0
    %126 = vmatpush1.msra.mxu0 0.0
    %127 = vmatprep.mubr.f32.mxu0 0.0
    %128 = vmatmul.mubr.f32.gmra.mrb[0].mxu0 %v58
    %v129 = vpop.f32.mrb[0].mxu0
    %v130 = vadd.f32 %v54, %v129
    %v131 = vpop.f32.mrb[0].mxu0
    %132 = vmatprep.mubr.f32.mxu0 0.0
    %133 = vmatmul.mubr.f32.gmra.mrb[0].mxu0 %v61
    %v134 = vpop.f32.mrb[0].mxu0
    %v135 = vadd.f32 %v54, %v134
    %v136 = vpop.f32.mrb[0].mxu0
    %137 = vdwg.mxu0
    %139 = vrot.lane.b32.xlu0 %v130, 96
    %v140 = vpop.permute.xlu0 %139
    %vm141 = vcmask 130048
    %v142 = vsel %vm141, %v130, 0
    %v144 = vsel %vm141, %v140, 0
    %146 = vmatprep.subr.mxu0 0.0
    %147 = vmatpush1.xpose.msra.mxu0 %v144
    %148 = vmatprep.subr.mxu0 0.0
    %149 = vmatpush1.xpose.msra.mxu0 0.0
    %150 = vmatprep.subr.mxu0 0.0
    %151 = vmatpush1.xpose.msra.mxu0 0.0
    %152 = vmatprep.subr.mxu0 0.0
    %153 = vmatpush1.xpose.msra.mxu0 0.0
    %154 = vmatprep.subr.mxu0 0.0
    %155 = vmatpush1.xpose.msra.mxu0 0.0
    %156 = vmatprep.subr.mxu0 0.0
    %157 = vmatpush1.xpose.msra.mxu0 0.0
    %158 = vmatprep.subr.mxu0 0.0
    %159 = vmatpush1.xpose.msra.mxu0 0.0
    %160 = vmatprep.subr.mxu0 0.0
    %161 = vmatpush1.xpose.msra.mxu0 0.0
    %162 = vmatprep.subr.mxu0 0.0
    %163 = vmatpush1.xpose.msra.mxu0 0.0
    %164 = vmatprep.subr.mxu0 0.0
    %165 = vmatpush1.xpose.msra.mxu0 0.0
    %166 = vmatprep.subr.mxu0 0.0
    %167 = vmatpush1.xpose.msra.mxu0 0.0
    %168 = vmatprep.subr.mxu0 0.0
    %169 = vmatpush1.xpose.msra.mxu0 0.0
    %170 = vmatprep.subr.mxu0 0.0
    %171 = vmatpush1.xpose.msra.mxu0 0.0
    %172 = vmatprep.subr.mxu0 0.0
    %173 = vmatpush1.xpose.msra.mxu0 0.0
    %174 = vmatprep.subr.mxu0 0.0
    %175 = vmatpush1.xpose.msra.mxu0 0.0
    %176 = vmatprep.subr.mxu0 0.0
    %177 = vmatpush1.xpose.msra.mxu0 0.0
    %178 = vmatprep.subr.mxu0 0.0
    %179 = vmatpush1.xpose.msra.mxu0 0.0
    %180 = vmatprep.subr.mxu0 0.0
    %181 = vmatpush1.xpose.msra.mxu0 0.0
    %182 = vmatprep.subr.mxu0 0.0
    %183 = vmatpush1.xpose.msra.mxu0 0.0
    %184 = vmatprep.subr.mxu0 0.0
    %185 = vmatpush1.xpose.msra.mxu0 0.0
    %186 = vmatprep.subr.mxu0 0.0
    %187 = vmatpush1.xpose.msra.mxu0 0.0
    %188 = vmatprep.subr.mxu0 0.0
    %189 = vmatpush1.xpose.msra.mxu0 0.0
    %190 = vmatprep.subr.mxu0 0.0
    %191 = vmatpush1.xpose.msra.mxu0 0.0
    %192 = vmatprep.subr.mxu0 0.0
    %193 = vmatpush1.xpose.msra.mxu0 0.0
    %194 = vmatprep.subr.mxu0 0.0
    %195 = vmatpush1.xpose.msra.mxu0 0.0
    %196 = vmatprep.subr.mxu0 0.0
    %197 = vmatpush1.xpose.msra.mxu0 0.0
    %198 = vmatprep.subr.mxu0 0.0
    %199 = vmatpush1.xpose.msra.mxu0 0.0
    %200 = vmatprep.subr.mxu0 0.0
    %201 = vmatpush1.xpose.msra.mxu0 0.0
    %202 = vmatprep.subr.mxu0 0.0
    %203 = vmatpush1.xpose.msra.mxu0 0.0
    %204 = vmatprep.subr.mxu0 0.0
    %205 = vmatpush1.xpose.msra.mxu0 0.0
    %206 = vmatprep.subr.mxu0 0.0
    %207 = vmatpush1.xpose.msra.mxu0 0.0
    %208 = vmatprep.subr.mxu0 0.0
    %209 = vmatpush1.xpose.msra.mxu0 0.0
    %210 = vmatprep.mubr.f32.mxu0 0.0
    %211 = vmatmul.mubr.f32.gmra.mrb[0].mxu0 %v142
    %v212 = vpop.f32.mrb[0].mxu0
    %v213 = vadd.f32 0.0, %v212
    %v214 = vpop.f32.mrb[0].mxu0
    %215 = vdwg.mxu0
    %vm216 = vcmask 64512
    %v217 = vsel %vm216, %v213, -inf
    %218 = vmax.xlane.f32.xlu0 %v217
    %v219 = vpop.xlane.xlu0 %218
    %v220 = vsub.f32 %v213, %v219
    %v221 = vmul.f32 %v220, 1.442695
    %v222 = vpow.pop %v221
    %v223 = vsel %vm216, %v222, 0.0
    %224 = vadd.xlane.f32.xlu0 %v223
    %v225 = vpop.xlane.xlu0 %224
    %v226 = vrcp.pop %v225
    %v227 = vmul.f32 %v222, %v226
    %228 = vrot.lane.b32.xlu0 %v130, 64
    %v229 = vpop.permute.xlu0 %228
    %v232 = vsel %vm216, %v227, 0
    %234 = vmatprep.subr.mxu0 0.0
    %235 = vmatpush1.msra.mxu0 %v229
    %236 = vmatprep.subr.mxu0 0.0
    %237 = vmatpush1.msra.mxu0 0.0
    %238 = vmatprep.subr.mxu0 0.0
    %239 = vmatpush1.msra.mxu0 0.0
    %240 = vmatprep.subr.mxu0 0.0
    %241 = vmatpush1.msra.mxu0 0.0
    %242 = vmatprep.subr.mxu0 0.0
    %243 = vmatpush1.msra.mxu0 0.0
    %244 = vmatprep.subr.mxu0 0.0
    %245 = vmatpush1.msra.mxu0 0.0
    %246 = vmatprep.subr.mxu0 0.0
    %247 = vmatpush1.msra.mxu0 0.0
    %248 = vmatprep.subr.mxu0 0.0
    %249 = vmatpush1.msra.mxu0 0.0
    %250 = vmatprep.subr.mxu0 0.0
    %251 = vmatpush1.msra.mxu0 0.0
    %252 = vmatprep.subr.mxu0 0.0
    %253 = vmatpush1.msra.mxu0 0.0
    %254 = vmatprep.subr.mxu0 0.0
    %255 = vmatpush1.msra.mxu0 0.0
    %256 = vmatprep.subr.mxu0 0.0
    %257 = vmatpush1.msra.mxu0 0.0
    %258 = vmatprep.subr.mxu0 0.0
    %259 = vmatpush1.msra.mxu0 0.0
    %260 = vmatprep.subr.mxu0 0.0
    %261 = vmatpush1.msra.mxu0 0.0
    %262 = vmatprep.subr.mxu0 0.0
    %263 = vmatpush1.msra.mxu0 0.0
    %264 = vmatprep.subr.mxu0 0.0
    %265 = vmatpush1.msra.mxu0 0.0
    %266 = vmatprep.subr.mxu0 0.0
    %267 = vmatpush1.msra.mxu0 0.0
    %268 = vmatprep.subr.mxu0 0.0
    %269 = vmatpush1.msra.mxu0 0.0
    %270 = vmatprep.subr.mxu0 0.0
    %271 = vmatpush1.msra.mxu0 0.0
    %272 = vmatprep.subr.mxu0 0.0
    %273 = vmatpush1.msra.mxu0 0.0
    %274 = vmatprep.subr.mxu0 0.0
    %275 = vmatpush1.msra.mxu0 0.0
    %276 = vmatprep.subr.mxu0 0.0
    %277 = vmatpush1.msra.mxu0 0.0
    %278 = vmatprep.subr.mxu0 0.0
    %279 = vmatpush1.msra.mxu0 0.0
    %280 = vmatprep.subr.mxu0 0.0
    %281 = vmatpush1.msra.mxu0 0.0
    %282 = vmatprep.subr.mxu0 0.0
    %283 = vmatpush1.msra.mxu0 0.0
    %284 = vmatprep.subr.mxu0 0.0
    %285 = vmatpush1.msra.mxu0 0.0
    %286 = vmatprep.subr.mxu0 0.0
    %287 = vmatpush1.msra.mxu0 0.0
    %288 = vmatprep.subr.mxu0 0.0
    %289 = vmatpush1.msra.mxu0 0.0
    %290 = vmatprep.subr.mxu0 0.0
    %291 = vmatpush1.msra.mxu0 0.0
    %292 = vmatprep.subr.mxu0 0.0
    %293 = vmatpush1.msra.mxu0 0.0
    %294 = vmatprep.subr.mxu0 0.0
    %295 = vmatpush1.msra.mxu0 0.0
    %296 = vmatprep.subr.mxu0 0.0
    %297 = vmatpush1.msra.mxu0 0.0
    %298 = vmatprep.mubr.f32.mxu0 0.0
    %299 = vmatmul.mubr.f32.gmra.mrb[0].mxu0 %v232
    %v300 = vpop.f32.mrb[0].mxu0
    %v301 = vadd.f32 0.0, %v300
    %v302 = vpop.f32.mrb[0].mxu0
    %303 = vdwg.mxu0
    %304 = vrot.lane.b32.xlu0 %v130, 112
    %v305 = vpop.permute.xlu0 %304
    %306 = vrot.lane.b32.xlu0 %v130, 80
    %v307 = vpop.permute.xlu0 %306
    %v308 = vsel %vm141, %v305, 0
    %v310 = vsel %vm141, %v307, 0
    %312 = vmatprep.subr.mxu0 0.0
    %313 = vmatpush1.xpose.msra.mxu0 %v310
    %314 = vmatprep.subr.mxu0 0.0
    %315 = vmatpush1.xpose.msra.mxu0 0.0
    %316 = vmatprep.subr.mxu0 0.0
    %317 = vmatpush1.xpose.msra.mxu0 0.0
    %318 = vmatprep.subr.mxu0 0.0
    %319 = vmatpush1.xpose.msra.mxu0 0.0
    %320 = vmatprep.subr.mxu0 0.0
    %321 = vmatpush1.xpose.msra.mxu0 0.0
    %322 = vmatprep.subr.mxu0 0.0
    %323 = vmatpush1.xpose.msra.mxu0 0.0
    %324 = vmatprep.subr.mxu0 0.0
    %325 = vmatpush1.xpose.msra.mxu0 0.0
    %326 = vmatprep.subr.mxu0 0.0
    %327 = vmatpush1.xpose.msra.mxu0 0.0
    %328 = vmatprep.subr.mxu0 0.0
    %329 = vmatpush1.xpose.msra.mxu0 0.0
    %330 = vmatprep.subr.mxu0 0.0
    %331 = vmatpush1.xpose.msra.mxu0 0.0
    %332 = vmatprep.subr.mxu0 0.0
    %333 = vmatpush1.xpose.msra.mxu0 0.0
    %334 = vmatprep.subr.mxu0 0.0
    %335 = vmatpush1.xpose.msra.mxu0 0.0
    %336 = vmatprep.subr.mxu0 0.0
    %337 = vmatpush1.xpose.msra.mxu0 0.0
    %338 = vmatprep.subr.mxu0 0.0
    %339 = vmatpush1.xpose.msra.mxu0 0.0
    %340 = vmatprep.subr.mxu0 0.0
    %341 = vmatpush1.xpose.msra.mxu0 0.0
    %342 = vmatprep.subr.mxu0 0.0
    %343 = vmatpush1.xpose.msra.mxu0 0.0
    %344 = vmatprep.subr.mxu0 0.0
    %345 = vmatpush1.xpose.msra.mxu0 0.0
    %346 = vmatprep.subr.mxu0 0.0
    %347 = vmatpush1.xpose.msra.mxu0 0.0
    %348 = vmatprep.subr.mxu0 0.0
    %349 = vmatpush1.xpose.msra.mxu0 0.0
    %350 = vmatprep.subr.mxu0 0.0
    %351 = vmatpush1.xpose.msra.mxu0 0.0
    %352 = vmatprep.subr.mxu0 0.0
    %353 = vmatpush1.xpose.msra.mxu0 0.0
    %354 = vmatprep.subr.mxu0 0.0
    %355 = vmatpush1.xpose.msra.mxu0 0.0
    %356 = vmatprep.subr.mxu0 0.0
    %357 = vmatpush1.xpose.msra.mxu0 0.0
    %358 = vmatprep.subr.mxu0 0.0
    %359 = vmatpush1.xpose.msra.mxu0 0.0
    %360 = vmatprep.subr.mxu0 0.0
    %361 = vmatpush1.xpose.msra.mxu0 0.0
    %362 = vmatprep.subr.mxu0 0.0
    %363 = vmatpush1.xpose.msra.mxu0 0.0
    %364 = vmatprep.subr.mxu0 0.0
    %365 = vmatpush1.xpose.msra.mxu0 0.0
    %366 = vmatprep.subr.mxu0 0.0
    %367 = vmatpush1.xpose.msra.mxu0 0.0
    %368 = vmatprep.subr.mxu0 0.0
    %369 = vmatpush1.xpose.msra.mxu0 0.0
    %370 = vmatprep.subr.mxu0 0.0
    %371 = vmatpush1.xpose.msra.mxu0 0.0
    %372 = vmatprep.subr.mxu0 0.0
    %373 = vmatpush1.xpose.msra.mxu0 0.0
    %374 = vmatprep.subr.mxu0 0.0
    %375 = vmatpush1.xpose.msra.mxu0 0.0
    %376 = vmatprep.mubr.f32.mxu0 0.0
    %377 = vmatmul.mubr.f32.gmra.mrb[0].mxu0 %v308
    %v378 = vpop.f32.mrb[0].mxu0
    %v379 = vadd.f32 0.0, %v378
    %v380 = vpop.f32.mrb[0].mxu0
    %381 = vdwg.mxu0
    %v382 = vsel %vm216, %v379, -inf
    %383 = vmax.xlane.f32.xlu0 %v382
    %v384 = vpop.xlane.xlu0 %383
    %v385 = vsub.f32 %v379, %v384
    %v386 = vmul.f32 %v385, 1.442695
    %v387 = vpow.pop %v386
    %v388 = vsel %vm216, %v387, 0.0
    %389 = vadd.xlane.f32.xlu0 %v388
    %v390 = vpop.xlane.xlu0 %389
    %v391 = vrcp.pop %v390
    %v392 = vmul.f32 %v387, %v391
    %393 = vrot.lane.b32.xlu0 %v130, 48
    %v394 = vpop.permute.xlu0 %393
    %v397 = vsel %vm216, %v392, 0
    %399 = vmatprep.subr.mxu0 0.0
    %400 = vmatpush1.msra.mxu0 %v394
    %401 = vmatprep.subr.mxu0 0.0
    %402 = vmatpush1.msra.mxu0 0.0
    %403 = vmatprep.subr.mxu0 0.0
    %404 = vmatpush1.msra.mxu0 0.0
    %405 = vmatprep.subr.mxu0 0.0
    %406 = vmatpush1.msra.mxu0 0.0
    %407 = vmatprep.subr.mxu0 0.0
    %408 = vmatpush1.msra.mxu0 0.0
    %409 = vmatprep.subr.mxu0 0.0
    %410 = vmatpush1.msra.mxu0 0.0
    %411 = vmatprep.subr.mxu0 0.0
    %412 = vmatpush1.msra.mxu0 0.0
    %413 = vmatprep.subr.mxu0 0.0
    %414 = vmatpush1.msra.mxu0 0.0
    %415 = vmatprep.subr.mxu0 0.0
    %416 = vmatpush1.msra.mxu0 0.0
    %417 = vmatprep.subr.mxu0 0.0
    %418 = vmatpush1.msra.mxu0 0.0
    %419 = vmatprep.subr.mxu0 0.0
    %420 = vmatpush1.msra.mxu0 0.0
    %421 = vmatprep.subr.mxu0 0.0
    %422 = vmatpush1.msra.mxu0 0.0
    %423 = vmatprep.subr.mxu0 0.0
    %424 = vmatpush1.msra.mxu0 0.0
    %425 = vmatprep.subr.mxu0 0.0
    %426 = vmatpush1.msra.mxu0 0.0
    %427 = vmatprep.subr.mxu0 0.0
    %428 = vmatpush1.msra.mxu0 0.0
    %429 = vmatprep.subr.mxu0 0.0
    %430 = vmatpush1.msra.mxu0 0.0
    %431 = vmatprep.subr.mxu0 0.0
    %432 = vmatpush1.msra.mxu0 0.0
    %433 = vmatprep.subr.mxu0 0.0
    %434 = vmatpush1.msra.mxu0 0.0
    %435 = vmatprep.subr.mxu0 0.0
    %436 = vmatpush1.msra.mxu0 0.0
    %437 = vmatprep.subr.mxu0 0.0
    %438 = vmatpush1.msra.mxu0 0.0
    %439 = vmatprep.subr.mxu0 0.0
    %440 = vmatpush1.msra.mxu0 0.0
    %441 = vmatprep.subr.mxu0 0.0
    %442 = vmatpush1.msra.mxu0 0.0
    %443 = vmatprep.subr.mxu0 0.0
    %444 = vmatpush1.msra.mxu0 0.0
    %445 = vmatprep.subr.mxu0 0.0
    %446 = vmatpush1.msra.mxu0 0.0
    %447 = vmatprep.subr.mxu0 0.0
    %448 = vmatpush1.msra.mxu0 0.0
    %449 = vmatprep.subr.mxu0 0.0
    %450 = vmatpush1.msra.mxu0 0.0
    %451 = vmatprep.subr.mxu0 0.0
    %452 = vmatpush1.msra.mxu0 0.0
    %453 = vmatprep.subr.mxu0 0.0
    %454 = vmatpush1.msra.mxu0 0.0
    %455 = vmatprep.subr.mxu0 0.0
    %456 = vmatpush1.msra.mxu0 0.0
    %457 = vmatprep.subr.mxu0 0.0
    %458 = vmatpush1.msra.mxu0 0.0
    %459 = vmatprep.subr.mxu0 0.0
    %460 = vmatpush1.msra.mxu0 0.0
    %461 = vmatprep.subr.mxu0 0.0
    %462 = vmatpush1.msra.mxu0 0.0
    %463 = vmatprep.mubr.f32.mxu0 0.0
    %464 = vmatmul.mubr.f32.gmra.mrb[0].mxu0 %v397
    %v465 = vpop.f32.mrb[0].mxu0
    %v466 = vadd.f32 0.0, %v465
    %v467 = vpop.f32.mrb[0].mxu0
    %468 = vdwg.mxu0
    %470 = vrot.lane.b32.xlu0 %v466, 16
    %v471 = vpop.permute.xlu0 %470
    %v473 = vsel %vm141, %v301, %v471
    %475 = vrot.lane.b32.xlu0 %v135, 96
    %v476 = vpop.permute.xlu0 %475
    %v477 = vsel %vm141, %v135, 0
    %v479 = vsel %vm141, %v476, 0
    %481 = vmatprep.subr.mxu0 0.0
    %482 = vmatpush1.xpose.msra.mxu0 %v479
    %483 = vmatprep.subr.mxu0 0.0
    %484 = vmatpush1.xpose.msra.mxu0 0.0
    %485 = vmatprep.subr.mxu0 0.0
    %486 = vmatpush1.xpose.msra.mxu0 0.0
    %487 = vmatprep.subr.mxu0 0.0
    %488 = vmatpush1.xpose.msra.mxu0 0.0
    %489 = vmatprep.subr.mxu0 0.0
    %490 = vmatpush1.xpose.msra.mxu0 0.0
    %491 = vmatprep.subr.mxu0 0.0
    %492 = vmatpush1.xpose.msra.mxu0 0.0
    %493 = vmatprep.subr.mxu0 0.0
    %494 = vmatpush1.xpose.msra.mxu0 0.0
    %495 = vmatprep.subr.mxu0 0.0
    %496 = vmatpush1.xpose.msra.mxu0 0.0
    %497 = vmatprep.subr.mxu0 0.0
    %498 = vmatpush1.xpose.msra.mxu0 0.0
    %499 = vmatprep.subr.mxu0 0.0
    %500 = vmatpush1.xpose.msra.mxu0 0.0
    %501 = vmatprep.subr.mxu0 0.0
    %502 = vmatpush1.xpose.msra.mxu0 0.0
    %503 = vmatprep.subr.mxu0 0.0
    %504 = vmatpush1.xpose.msra.mxu0 0.0
    %505 = vmatprep.subr.mxu0 0.0
    %506 = vmatpush1.xpose.msra.mxu0 0.0
    %507 = vmatprep.subr.mxu0 0.0
    %508 = vmatpush1.xpose.msra.mxu0 0.0
    %509 = vmatprep.subr.mxu0 0.0
    %510 = vmatpush1.xpose.msra.mxu0 0.0
    %511 = vmatprep.subr.mxu0 0.0
    %512 = vmatpush1.xpose.msra.mxu0 0.0
    %513 = vmatprep.subr.mxu0 0.0
    %514 = vmatpush1.xpose.msra.mxu0 0.0
    %515 = vmatprep.subr.mxu0 0.0
    %516 = vmatpush1.xpose.msra.mxu0 0.0
    %517 = vmatprep.subr.mxu0 0.0
    %518 = vmatpush1.xpose.msra.mxu0 0.0
    %519 = vmatprep.subr.mxu0 0.0
    %520 = vmatpush1.xpose.msra.mxu0 0.0
    %521 = vmatprep.subr.mxu0 0.0
    %522 = vmatpush1.xpose.msra.mxu0 0.0
    %523 = vmatprep.subr.mxu0 0.0
    %524 = vmatpush1.xpose.msra.mxu0 0.0
    %525 = vmatprep.subr.mxu0 0.0
    %526 = vmatpush1.xpose.msra.mxu0 0.0
    %527 = vmatprep.subr.mxu0 0.0
    %528 = vmatpush1.xpose.msra.mxu0 0.0
    %529 = vmatprep.subr.mxu0 0.0
    %530 = vmatpush1.xpose.msra.mxu0 0.0
    %531 = vmatprep.subr.mxu0 0.0
    %532 = vmatpush1.xpose.msra.mxu0 0.0
    %533 = vmatprep.subr.mxu0 0.0
    %534 = vmatpush1.xpose.msra.mxu0 0.0
    %535 = vmatprep.subr.mxu0 0.0
    %536 = vmatpush1.xpose.msra.mxu0 0.0
    %537 = vmatprep.subr.mxu0 0.0
    %538 = vmatpush1.xpose.msra.mxu0 0.0
    %539 = vmatprep.subr.mxu0 0.0
    %540 = vmatpush1.xpose.msra.mxu0 0.0
    %541 = vmatprep.subr.mxu0 0.0
    %542 = vmatpush1.xpose.msra.mxu0 0.0
    %543 = vmatprep.subr.mxu0 0.0
    %544 = vmatpush1.xpose.msra.mxu0 0.0
    %545 = vmatprep.mubr.f32.mxu0 0.0
    %546 = vmatmul.mubr.f32.gmra.mrb[0].mxu0 %v477
    %v547 = vpop.f32.mrb[0].mxu0
    %v548 = vadd.f32 0.0, %v547
    %v549 = vpop.f32.mrb[0].mxu0
    %550 = vdwg.mxu0
    %v551 = vsel %vm216, %v548, -inf
    %552 = vmax.xlane.f32.xlu0 %v551
    %v553 = vpop.xlane.xlu0 %552
    %v554 = vsub.f32 %v548, %v553
    %v555 = vmul.f32 %v554, 1.442695
    %v556 = vpow.pop %v555
    %v557 = vsel %vm216, %v556, 0.0
    %558 = vadd.xlane.f32.xlu0 %v557
    %v559 = vpop.xlane.xlu0 %558
    %v560 = vrcp.pop %v559
    %v561 = vmul.f32 %v556, %v560
    %562 = vrot.lane.b32.xlu0 %v135, 64
    %v563 = vpop.permute.xlu0 %562
    %v566 = vsel %vm216, %v561, 0
    %568 = vmatprep.subr.mxu0 0.0
    %569 = vmatpush1.msra.mxu0 %v563
    %570 = vmatprep.subr.mxu0 0.0
    %571 = vmatpush1.msra.mxu0 0.0
    %572 = vmatprep.subr.mxu0 0.0
    %573 = vmatpush1.msra.mxu0 0.0
    %574 = vmatprep.subr.mxu0 0.0
    %575 = vmatpush1.msra.mxu0 0.0
    %576 = vmatprep.subr.mxu0 0.0
    %577 = vmatpush1.msra.mxu0 0.0
    %578 = vmatprep.subr.mxu0 0.0
    %579 = vmatpush1.msra.mxu0 0.0
    %580 = vmatprep.subr.mxu0 0.0
    %581 = vmatpush1.msra.mxu0 0.0
    %582 = vmatprep.subr.mxu0 0.0
    %583 = vmatpush1.msra.mxu0 0.0
    %584 = vmatprep.subr.mxu0 0.0
    %585 = vmatpush1.msra.mxu0 0.0
    %586 = vmatprep.subr.mxu0 0.0
    %587 = vmatpush1.msra.mxu0 0.0
    %588 = vmatprep.subr.mxu0 0.0
    %589 = vmatpush1.msra.mxu0 0.0
    %590 = vmatprep.subr.mxu0 0.0
    %591 = vmatpush1.msra.mxu0 0.0
    %592 = vmatprep.subr.mxu0 0.0
    %593 = vmatpush1.msra.mxu0 0.0
    %594 = vmatprep.subr.mxu0 0.0
    %595 = vmatpush1.msra.mxu0 0.0
    %596 = vmatprep.subr.mxu0 0.0
    %597 = vmatpush1.msra.mxu0 0.0
    %598 = vmatprep.subr.mxu0 0.0
    %599 = vmatpush1.msra.mxu0 0.0
    %600 = vmatprep.subr.mxu0 0.0
    %601 = vmatpush1.msra.mxu0 0.0
    %602 = vmatprep.subr.mxu0 0.0
    %603 = vmatpush1.msra.mxu0 0.0
    %604 = vmatprep.subr.mxu0 0.0
    %605 = vmatpush1.msra.mxu0 0.0
    %606 = vmatprep.subr.mxu0 0.0
    %607 = vmatpush1.msra.mxu0 0.0
    %608 = vmatprep.subr.mxu0 0.0
    %609 = vmatpush1.msra.mxu0 0.0
    %610 = vmatprep.subr.mxu0 0.0
    %611 = vmatpush1.msra.mxu0 0.0
    %612 = vmatprep.subr.mxu0 0.0
    %613 = vmatpush1.msra.mxu0 0.0
    %614 = vmatprep.subr.mxu0 0.0
    %615 = vmatpush1.msra.mxu0 0.0
    %616 = vmatprep.subr.mxu0 0.0
    %617 = vmatpush1.msra.mxu0 0.0
    %618 = vmatprep.subr.mxu0 0.0
    %619 = vmatpush1.msra.mxu0 0.0
    %620 = vmatprep.subr.mxu0 0.0
    %621 = vmatpush1.msra.mxu0 0.0
    %622 = vmatprep.subr.mxu0 0.0
    %623 = vmatpush1.msra.mxu0 0.0
    %624 = vmatprep.subr.mxu0 0.0
    %625 = vmatpush1.msra.mxu0 0.0
    %626 = vmatprep.subr.mxu0 0.0
    %627 = vmatpush1.msra.mxu0 0.0
    %628 = vmatprep.subr.mxu0 0.0
    %629 = vmatpush1.msra.mxu0 0.0
    %630 = vmatprep.subr.mxu0 0.0
    %631 = vmatpush1.msra.mxu0 0.0
    %632 = vmatprep.mubr.f32.mxu0 0.0
    %633 = vmatmul.mubr.f32.gmra.mrb[0].mxu0 %v566
    %v634 = vpop.f32.mrb[0].mxu0
    %v635 = vadd.f32 0.0, %v634
    %v636 = vpop.f32.mrb[0].mxu0
    %637 = vdwg.mxu0
    %638 = vrot.lane.b32.xlu0 %v135, 112
    %v639 = vpop.permute.xlu0 %638
    %640 = vrot.lane.b32.xlu0 %v135, 80
    %v641 = vpop.permute.xlu0 %640
    %v642 = vsel %vm141, %v639, 0
    %v644 = vsel %vm141, %v641, 0
    %646 = vmatprep.subr.mxu0 0.0
    %647 = vmatpush1.xpose.msra.mxu0 %v644
    %648 = vmatprep.subr.mxu0 0.0
    %649 = vmatpush1.xpose.msra.mxu0 0.0
    %650 = vmatprep.subr.mxu0 0.0
    %651 = vmatpush1.xpose.msra.mxu0 0.0
    %652 = vmatprep.subr.mxu0 0.0
    %653 = vmatpush1.xpose.msra.mxu0 0.0
    %654 = vmatprep.subr.mxu0 0.0
    %655 = vmatpush1.xpose.msra.mxu0 0.0
    %656 = vmatprep.subr.mxu0 0.0
    %657 = vmatpush1.xpose.msra.mxu0 0.0
    %658 = vmatprep.subr.mxu0 0.0
    %659 = vmatpush1.xpose.msra.mxu0 0.0
    %660 = vmatprep.subr.mxu0 0.0
    %661 = vmatpush1.xpose.msra.mxu0 0.0
    %662 = vmatprep.subr.mxu0 0.0
    %663 = vmatpush1.xpose.msra.mxu0 0.0
    %664 = vmatprep.subr.mxu0 0.0
    %665 = vmatpush1.xpose.msra.mxu0 0.0
    %666 = vmatprep.subr.mxu0 0.0
    %667 = vmatpush1.xpose.msra.mxu0 0.0
    %668 = vmatprep.subr.mxu0 0.0
    %669 = vmatpush1.xpose.msra.mxu0 0.0
    %670 = vmatprep.subr.mxu0 0.0
    %671 = vmatpush1.xpose.msra.mxu0 0.0
    %672 = vmatprep.subr.mxu0 0.0
    %673 = vmatpush1.xpose.msra.mxu0 0.0
    %674 = vmatprep.subr.mxu0 0.0
    %675 = vmatpush1.xpose.msra.mxu0 0.0
    %676 = vmatprep.subr.mxu0 0.0
    %677 = vmatpush1.xpose.msra.mxu0 0.0
    %678 = vmatprep.subr.mxu0 0.0
    %679 = vmatpush1.xpose.msra.mxu0 0.0
    %680 = vmatprep.subr.mxu0 0.0
    %681 = vmatpush1.xpose.msra.mxu0 0.0
    %682 = vmatprep.subr.mxu0 0.0
    %683 = vmatpush1.xpose.msra.mxu0 0.0
    %684 = vmatprep.subr.mxu0 0.0
    %685 = vmatpush1.xpose.msra.mxu0 0.0
    %686 = vmatprep.subr.mxu0 0.0
    %687 = vmatpush1.xpose.msra.mxu0 0.0
    %688 = vmatprep.subr.mxu0 0.0
    %689 = vmatpush1.xpose.msra.mxu0 0.0
    %690 = vmatprep.subr.mxu0 0.0
    %691 = vmatpush1.xpose.msra.mxu0 0.0
    %692 = vmatprep.subr.mxu0 0.0
    %693 = vmatpush1.xpose.msra.mxu0 0.0
    %694 = vmatprep.subr.mxu0 0.0
    %695 = vmatpush1.xpose.msra.mxu0 0.0
    %696 = vmatprep.subr.mxu0 0.0
    %697 = vmatpush1.xpose.msra.mxu0 0.0
    %698 = vmatprep.subr.mxu0 0.0
    %699 = vmatpush1.xpose.msra.mxu0 0.0
    %700 = vmatprep.subr.mxu0 0.0
    %701 = vmatpush1.xpose.msra.mxu0 0.0
    %702 = vmatprep.subr.mxu0 0.0
    %703 = vmatpush1.xpose.msra.mxu0 0.0
    %704 = vmatprep.subr.mxu0 0.0
    %705 = vmatpush1.xpose.msra.mxu0 0.0
    %706 = vmatprep.subr.mxu0 0.0
    %707 = vmatpush1.xpose.msra.mxu0 0.0
    %708 = vmatprep.subr.mxu0 0.0
    %709 = vmatpush1.xpose.msra.mxu0 0.0
    %710 = vmatprep.mubr.f32.mxu0 0.0
    %711 = vmatmul.mubr.f32.gmra.mrb[0].mxu0 %v642
    %v712 = vpop.f32.mrb[0].mxu0
    %v713 = vadd.f32 0.0, %v712
    %v714 = vpop.f32.mrb[0].mxu0
    %715 = vdwg.mxu0
    %v716 = vsel %vm216, %v713, -inf
    %717 = vmax.xlane.f32.xlu0 %v716
    %v718 = vpop.xlane.xlu0 %717
    %v719 = vsub.f32 %v713, %v718
    %v720 = vmul.f32 %v719, 1.442695
    %v721 = vpow.pop %v720
    %v722 = vsel %vm216, %v721, 0.0
    %723 = vadd.xlane.f32.xlu0 %v722
    %v724 = vpop.xlane.xlu0 %723
    %v725 = vrcp.pop %v724
    %v726 = vmul.f32 %v721, %v725
    %727 = vrot.lane.b32.xlu0 %v135, 48
    %v728 = vpop.permute.xlu0 %727
    %v731 = vsel %vm216, %v726, 0
    %733 = vmatprep.subr.mxu0 0.0
    %734 = vmatpush1.msra.mxu0 %v728
    %735 = vmatprep.subr.mxu0 0.0
    %736 = vmatpush1.msra.mxu0 0.0
    %737 = vmatprep.subr.mxu0 0.0
    %738 = vmatpush1.msra.mxu0 0.0
    %739 = vmatprep.subr.mxu0 0.0
    %740 = vmatpush1.msra.mxu0 0.0
    %741 = vmatprep.subr.mxu0 0.0
    %742 = vmatpush1.msra.mxu0 0.0
    %743 = vmatprep.subr.mxu0 0.0
    %744 = vmatpush1.msra.mxu0 0.0
    %745 = vmatprep.subr.mxu0 0.0
    %746 = vmatpush1.msra.mxu0 0.0
    %747 = vmatprep.subr.mxu0 0.0
    %748 = vmatpush1.msra.mxu0 0.0
    %749 = vmatprep.subr.mxu0 0.0
    %750 = vmatpush1.msra.mxu0 0.0
    %751 = vmatprep.subr.mxu0 0.0
    %752 = vmatpush1.msra.mxu0 0.0
    %753 = vmatprep.subr.mxu0 0.0
    %754 = vmatpush1.msra.mxu0 0.0
    %755 = vmatprep.subr.mxu0 0.0
    %756 = vmatpush1.msra.mxu0 0.0
    %757 = vmatprep.subr.mxu0 0.0
    %758 = vmatpush1.msra.mxu0 0.0
    %759 = vmatprep.subr.mxu0 0.0
    %760 = vmatpush1.msra.mxu0 0.0
    %761 = vmatprep.subr.mxu0 0.0
    %762 = vmatpush1.msra.mxu0 0.0
    %763 = vmatprep.subr.mxu0 0.0
    %764 = vmatpush1.msra.mxu0 0.0
    %765 = vmatprep.subr.mxu0 0.0
    %766 = vmatpush1.msra.mxu0 0.0
    %767 = vmatprep.subr.mxu0 0.0
    %768 = vmatpush1.msra.mxu0 0.0
    %769 = vmatprep.subr.mxu0 0.0
    %770 = vmatpush1.msra.mxu0 0.0
    %771 = vmatprep.subr.mxu0 0.0
    %772 = vmatpush1.msra.mxu0 0.0
    %773 = vmatprep.subr.mxu0 0.0
    %774 = vmatpush1.msra.mxu0 0.0
    %775 = vmatprep.subr.mxu0 0.0
    %776 = vmatpush1.msra.mxu0 0.0
    %777 = vmatprep.subr.mxu0 0.0
    %778 = vmatpush1.msra.mxu0 0.0
    %779 = vmatprep.subr.mxu0 0.0
    %780 = vmatpush1.msra.mxu0 0.0
    %781 = vmatprep.subr.mxu0 0.0
    %782 = vmatpush1.msra.mxu0 0.0
    %783 = vmatprep.subr.mxu0 0.0
    %784 = vmatpush1.msra.mxu0 0.0
    %785 = vmatprep.subr.mxu0 0.0
    %786 = vmatpush1.msra.mxu0 0.0
    %787 = vmatprep.subr.mxu0 0.0
    %788 = vmatpush1.msra.mxu0 0.0
    %789 = vmatprep.subr.mxu0 0.0
    %790 = vmatpush1.msra.mxu0 0.0
    %791 = vmatprep.subr.mxu0 0.0
    %792 = vmatpush1.msra.mxu0 0.0
    %793 = vmatprep.subr.mxu0 0.0
    %794 = vmatpush1.msra.mxu0 0.0
    %795 = vmatprep.subr.mxu0 0.0
    %796 = vmatpush1.msra.mxu0 0.0
    %797 = vmatprep.mubr.f32.mxu0 0.0
    %798 = vmatmul.mubr.f32.gmra.mrb[0].mxu0 %v731
    %v799 = vpop.f32.mrb[0].mxu0
    %v800 = vadd.f32 0.0, %v799
    %v801 = vpop.f32.mrb[0].mxu0
    %802 = vdwg.mxu0
    %804 = vrot.lane.b32.xlu0 %v800, 16
    %v805 = vpop.permute.xlu0 %804
    %v807 = vsel %vm141, %v635, %v805
    %808 = vst.msk [vmem:[#allocation7] sm:$0xff] %vm56, %v473
    %809 = vst.msk [vmem:[#allocation7 + $0x8] sm:$0xff] %vm56, %v807
    // Predicated region
    $region22: #{tpu_custom_call.1} parent=1 // pred_check
      _
    $region23: #{tpu_custom_call.1} parent=1 // pred_check_branch
      %811 = sbr.rel (0) target = $region25
    $region24: #{tpu_custom_call.1} parent=1 // pred_region
      %s813 = ssub.s32 256, 256
      %814 = vsyncadd [#allocation4], %s813
      %s815 = sshll.u32 [#allocation7], 4
      %s816 = int_to_ptr.vmem [resolvable:$true] %s815
      %821 = dma.vmem_to_hbm [thread:$0]  %s816, 256, %s3, [#allocation4], 128, 128, 8
    $region25: #{tpu_custom_call.1} parent=1 // pred_fallthru
      _
    // Predicated region
    $region26: #{tpu_custom_call.1} parent=1 // pred_check
      _
    $region27: #{tpu_custom_call.1} parent=1 // pred_check_branch
      %823 = sbr.rel (0) target = $region29
    $region28: #{tpu_custom_call.1} parent=1 // pred_region
      %824 = dma.done [#allocation4], 256
    $region29: #{tpu_custom_call.1} parent=1 // pred_fallthru
      _
    %825 = vsyncpa [#allocation3], 1
    %826 = vsyncpa [#allocation6], 1
    %827 = vsyncpa [#allocation4], 1

</llo_original>
